<compile_context>
chip_gen: v7x
topology: tpu7x:2x2x1
jax: 0.10.0
libtpu: 0.0.40
codegen_flags: <defaults>
</compile_context>

<pallas_src>
import math
import functools

import jax
import jax.numpy as jnp
from jax.experimental import pallas as pl
from jax.experimental.pallas import tpu as pltpu


# ---------------------------------------------------------------------------
# Fused forward kernel
#   refs layout (all VMEM):
#     xf_ref                       [Bb, F]        float features (batch tile)
#     ids_ref                      [Bb, L_total]  int32 id-list slab (batch tile)
#     w0f_ref                      [F,  H1]       first-layer weight, float segment
#     m_refs[f]                    [Vf, H1]       folded table@W0 segment per id feature
#     b0_ref                       [1,  H1]
#     (w_ref, b_ref) per extra layer
#     o_ref                        [Bb, OUT]      output tile (real width, no padding)
# ---------------------------------------------------------------------------
def _apply_act(x, act):
    if act == "relu":
        return jnp.maximum(x, 0.0)
    if act == "tanh":
        return jnp.tanh(x)
    if act == "linear":
        return x
    raise NotImplementedError(f"activation {act}")


def fused_embed_dnn_kernel(*refs, num_id_feats, col_ranges, vocab_sizes, activations):
    idx = 0
    xf_ref = refs[idx]; idx += 1
    ids_ref = refs[idx]; idx += 1
    w0f_ref = refs[idx]; idx += 1
    m_refs = refs[idx: idx + num_id_feats]; idx += num_id_feats
    b0_ref = refs[idx]; idx += 1
    n_rest = len(activations) - 1
    rest_refs = refs[idx: idx + 2 * n_rest]; idx += 2 * n_rest
    o_ref = refs[idx]

    xf = xf_ref[...]                      # [Bb, F]  f32
    ids = ids_ref[...]                    # [Bb, L_total] i32
    Bb = xf.shape[0]

    # layer-0 accumulation starts with the float-feature segment
    acc = jnp.dot(xf, w0f_ref[...], preferred_element_type=jnp.float32)

    # shared lane-id tensor, hoisted out of the per-feature loop
    v_max = max(vocab_sizes)
    lane_ids = jax.lax.broadcasted_iota(jnp.int32, (Bb, v_max), 1)

    for f in range(num_id_feats):
        cs, ce = col_ranges[f]
        V = vocab_sizes[f]
        ids_f = ids[:, cs:ce]             # [Bb, Lf] (static lane slice)
        lanes_f = lane_ids[:, :V]         # [Bb, V]

        # one-hot counts over the vocab + valid-id count, via cheap VPU compares
        counts = jnp.zeros((Bb, V), jnp.float32)
        denom = jnp.zeros((Bb, 1), jnp.float32)
        for l in range(ce - cs):          # short static unroll over list slots
            col = ids_f[:, l:l + 1]       # [Bb, 1]
            counts = counts + (col == lanes_f).astype(jnp.float32)
            denom = denom + (col != 0).astype(jnp.float32)

        # gather + average + layer-0 matmul, folded into one MXU dot:
        #   avg_f @ W0_f == (counts * inv) @ (tbl_f @ W0_f) == (counts*inv) @ M_f
        # row 0 of M_f is zero (padding row), so denom==0 rows contribute 0
        # without any select.
        inv = pl.reciprocal(jnp.maximum(denom, 1.0), approx=True)   # EUP slot
        acc = acc + jnp.dot(counts * inv, m_refs[f][...],
                            preferred_element_type=jnp.float32)

    x = _apply_act(acc + b0_ref[...], activations[0])
    for j in range(n_rest):
        w_ref = rest_refs[2 * j]
        b_ref = rest_refs[2 * j + 1]
        x = jnp.dot(x, w_ref[...], preferred_element_type=jnp.float32) + b_ref[...]
        x = _apply_act(x, activations[1 + j])

    o_ref[...] = x.astype(o_ref.dtype)    # real-width store (out_dim == full last dim)


# ---------------------------------------------------------------------------
# Wrapper: builds the batch grid, folds/splits weights, calls the fused kernel
# ---------------------------------------------------------------------------
def _choose_block_b(batch, requested):
    """Tile-size heuristic: big tiles (fewer grid steps), but cap for tiny
    batches and aim for >=2 grid steps when the batch allows (v7x megacore)."""
    bb = max(8, (int(requested) // 8) * 8)
    b8 = ((batch + 7) // 8) * 8                   # batch rounded to sublane multiple
    bb = min(bb, b8)
    if b8 >= 16 and b8 <= bb:                     # whole batch fit in one tile
        bb = max(8, ((b8 // 2) // 8) * 8)         # split so both TCs get work
    return bb


def embed_dnn_forward(params, cfg, X_float, X_id_list, X_id_list_idxs, *, block_b=1024):
    B, F = X_float.shape
    L_total = X_id_list.shape[1]
    id_order = cfg["id_feature_order"]
    n_id = len(id_order)
    acts = tuple(cfg["activations"])
    n_layers = len(params["layers"])
    assert n_layers >= 2, "fused path expects at least two linear layers"

    # Static per-feature column ranges (build-time metadata, kept host-side so
    # the pallas_call itself is jit-friendly).  Will fail if idxs are traced.
    col_ranges = []
    c = 0
    for _ in id_order:
        col_ranges.append((int(X_id_list_idxs[0][c]), int(X_id_list_idxs[0][c + 1])))
        c += 2
    col_ranges = tuple(col_ranges)

    tables = [
        params["embeddings"][cfg["embeddings_idx_map"][cfg["feature_specs"][f]["product_set_id"]]]
        for f in id_order
    ]
    embed_dims = [int(t.shape[1]) for t in tables]
    vocab_sizes = tuple(int(t.shape[0]) for t in tables)

    # split the first-layer weight [D_in, H1] into [float | emb_1 | ... ] row
    # blocks, then FOLD each embedding table into its segment: M_f = tbl_f @ W0_f.
    w0, b0 = params["layers"][0]
    H1 = int(w0.shape[1])
    w0_float = w0[:F, :]
    folded = []
    off = F
    for t, E in zip(tables, embed_dims):
        seg = w0[off: off + E, :]
        folded.append(jnp.dot(t, seg, precision=jax.lax.Precision.HIGHEST))  # [V_f, H1]
        off += E
    assert off == w0.shape[0]

    rest = [params["layers"][i] for i in range(1, n_layers)]
    out_dim = int(rest[-1][0].shape[1])

    # pad batch to a multiple of the sublane-aligned batch tile
    bb = _choose_block_b(B, block_b)
    Bp = ((B + bb - 1) // bb) * bb
    xf_p = jnp.pad(X_float, ((0, Bp - B), (0, 0)))
    ids_p = jnp.pad(X_id_list.astype(jnp.int32), ((0, Bp - B), (0, 0)))
    nb = Bp // bb

    def batch_spec(width):
        return pl.BlockSpec((bb, width), lambda i: (i, 0))

    def whole_spec(arr):
        return pl.BlockSpec(arr.shape, lambda i: (0, 0))   # VMEM-resident across grid

    operands = [xf_p, ids_p, w0_float] + folded + [b0]
    for (w, b) in rest:
        operands += [w, b]

    in_specs = [batch_spec(F), batch_spec(L_total)]
    in_specs += [whole_spec(a) for a in operands[2:]]
    # out_dim (8) == full last dim, so an unpadded block is legal; this avoids
    # the 16x HBM write amplification of a 128-lane padded output.
    out_specs = batch_spec(out_dim)

    flops = 2 * Bp * (
        F * H1
        + sum(v * H1 for v in vocab_sizes)
        + sum(int(w.shape[0]) * int(w.shape[1]) for (w, _) in rest)
    )
    transcendentals = Bp * n_id                               # EUP reciprocals
    bytes_accessed = 4 * (
        xf_p.size + ids_p.size + Bp * out_dim
        + w0_float.size + sum(m.size for m in folded) + b0.size
        + sum(w.size + b.size for (w, b) in rest)
    )

    kernel = functools.partial(
        fused_embed_dnn_kernel,
        num_id_feats=n_id,
        col_ranges=col_ranges,
        vocab_sizes=vocab_sizes,
        activations=acts,
    )

    out = pl.pallas_call(
        kernel,
        out_shape=jax.ShapeDtypeStruct((Bp, out_dim), jnp.float32),
        grid_spec=pltpu.PrefetchScalarGridSpec(
            num_scalar_prefetch=0,
            grid=(nb,),
            in_specs=in_specs,
            out_specs=out_specs,
        ),
        compiler_params=pltpu.CompilerParams(
            dimension_semantics=("parallel",),        # shards batch tiles on v7x
            vmem_limit_bytes=32 * 1024 * 1024,        # explicit budget (v5e default is 16 MiB)
        ),
        cost_estimate=pl.CostEstimate(
            flops=int(flops),
            transcendentals=int(transcendentals),
            bytes_accessed=int(bytes_accessed)),
    )(*operands)

    result = out[:B]
    if cfg.get("is_classification", False):
        result = jax.nn.softmax(result, axis=1)
    return result


# ---------------------------------------------------------------------------
# Parameter construction (matches the torch module __init__ semantics)
# ---------------------------------------------------------------------------
def gaussian_fill_w_gain(key, shape, activation, dim_in, min_std=0.0):
    gain = math.sqrt(2) if activation == "relu" else 1.0
    std = max(gain * math.sqrt(1.0 / dim_in), min_std)
    return std * jax.random.normal(key, shape, dtype=jnp.float32)


def build_embed_dnn(key, layers, activations, feature_specs, embedding_info,
                    id_feature_order, min_std=0.0):
    assert len(layers) >= 2
    params = {"embeddings": [], "layers": []}
    embeddings_idx_map = {}
    # embedding tables: nn.Embedding default N(0,1) init, padding row 0 zeroed
    for feature_name in id_feature_order:
        ps_id = feature_specs[feature_name]["product_set_id"]
        if ps_id not in embeddings_idx_map:
            info = embedding_info[ps_id]
            key, sub = jax.random.split(key)
            tbl = jax.random.normal(
                sub, (info["num_ids"] + 1, info["embedding_dim"]), dtype=jnp.float32)
            tbl = tbl.at[0].set(0.0)          # padding_idx=0
            embeddings_idx_map[ps_id] = len(params["embeddings"])
            params["embeddings"].append(tbl)
    # linear layers: gaussian_fill_w_gain weights, zero bias
    # (torch weight is [out, in]; we store its transpose [in, out])
    # TODO(synk): bf16 weight/activation cast (v6e/v7x MXU) only pays off for
    # production-sized hidden layers; left off at H1=32/out=8 for a strict f32 check.
    for i, layer in enumerate(layers[1:]):
        key, sub = jax.random.split(key)
        w = gaussian_fill_w_gain(sub, (layers[i], layer), activations[i],
                                 layers[i], min_std)
        b = jnp.zeros((1, layer), dtype=jnp.float32)
        params["layers"].append((w, b))
    cfg = {
        "activations": activations,
        "feature_specs": feature_specs,
        "id_feature_order": id_feature_order,
        "embeddings_idx_map": embeddings_idx_map,
        "is_classification": False,
    }
    return params, cfg


# ---------------------------------------------------------------------------
# Pure-JAX reference (mirrors the torch forward exactly) for a sanity check
# ---------------------------------------------------------------------------
def embed_dnn_reference(params, cfg, X_float, X_id_list, X_id_list_idxs):
    x = X_float
    c = 0
    for feature_name in cfg["id_feature_order"]:
        ps_id = cfg["feature_specs"][feature_name]["product_set_id"]
        table = params["embeddings"][cfg["embeddings_idx_map"][ps_id]]
        cs = int(X_id_list_idxs[0][c]); ce = int(X_id_list_idxs[0][c + 1])
        emb = jnp.take(table, X_id_list[:, cs:ce], axis=0)          # [B, L, E]
        valid = (jnp.sum(emb, axis=2, keepdims=True) != 0).astype(jnp.float32)
        denom = jnp.sum(valid, axis=(1, 2))[:, None]
        avg = jnp.sum(emb, axis=1) / denom
        avg = jnp.where(jnp.isnan(avg), 0.0, avg)
        x = jnp.concatenate([x, avg], axis=1)
        c += 2
    for i, activation in enumerate(cfg["activations"]):
        w, b = params["layers"][i]
        x = jnp.dot(x, w, precision=jax.lax.Precision.HIGHEST) + b
        if activation == "relu":
            x = jnp.maximum(x, 0.0)
        elif activation == "tanh":
            x = jnp.tanh(x)
    if cfg["is_classification"]:
        x = jax.nn.softmax(x, axis=1)
    return x


if __name__ == "__main__":
    key = jax.random.PRNGKey(0)

    # module configuration
    feature_specs = {
        "id_feat_a": {"product_set_id": "ps1"},
        "id_feat_b": {"product_set_id": "ps2"},
    }
    embedding_info = {
        "ps1": {"num_ids": 10, "embedding_dim": 8},
        "ps2": {"num_ids": 6, "embedding_dim": 8},
    }
    id_feature_order = ["id_feat_a", "id_feat_b"]
    float_dim = 4
    layers = [float_dim + 8 + 8, 32, 8]
    activations = ["relu", "linear"]

    key, pkey = jax.random.split(key)
    params, cfg = build_embed_dnn(pkey, layers, activations, feature_specs,
                                  embedding_info, id_feature_order)

    # inputs
    B = 4
    key, xkey = jax.random.split(key)
    X_float = jax.random.normal(xkey, (B, float_dim), dtype=jnp.float32)
    X_id_list = jnp.array(
        [[1, 2, 0, 3, 0, 0],
         [0, 0, 0, 1, 2, 3],
         [4, 5, 6, 0, 0, 0],
         [7, 0, 0, 2, 0, 4]], dtype=jnp.int32)
    # feature a uses cols [0,3), feature b uses cols [3,6)
    X_id_list_idxs = [[0, 3, 3, 6]]

    out = embed_dnn_forward(params, cfg, X_float, X_id_list, X_id_list_idxs)
    out = jax.block_until_ready(out)

    ref = embed_dnn_reference(params, cfg, X_float, X_id_list, X_id_list_idxs)
    # tolerance absorbs: MXU f32 multi-pass vs XLA HIGHEST, host-side table@W0
    # fold (re-association), and the ~1e-4 rel-err approx EUP reciprocal
    if not jnp.allclose(out, ref, atol=1e-3, rtol=1e-3):
        raise AssertionError("Pallas output does not match reference")

    print("KERNEL_OK")
</pallas_src>

<mosaic_0001>
module attributes {stable_mosaic.version = 11 : i64} {
  func.func @fused_embed_dnn_kernel(%arg0: i32, %arg1: memref<8x4xf32, #tpu.memory_space<vmem>>, %arg2: memref<8x6xi32, #tpu.memory_space<vmem>>, %arg3: memref<4x32xf32, #tpu.memory_space<vmem>>, %arg4: memref<11x32xf32, #tpu.memory_space<vmem>>, %arg5: memref<7x32xf32, #tpu.memory_space<vmem>>, %arg6: memref<1x32xf32, #tpu.memory_space<vmem>>, %arg7: memref<32x8xf32, #tpu.memory_space<vmem>>, %arg8: memref<1x8xf32, #tpu.memory_space<vmem>>, %arg9: memref<8x8xf32, #tpu.memory_space<vmem>>) attributes {dimension_semantics = [#tpu.dimension_semantics<parallel>], iteration_bounds = array<i64: 1>, scalar_prefetch = 0 : i64, scratch_operands = 0 : i64, tpu.core_type = #tpu.core_type<tc>, window_params = [{transform_indices = @transform_0, window_bounds = array<i64: 8, 4>}, {transform_indices = @transform_1, window_bounds = array<i64: 8, 6>}, {pipeline_mode = #tpu.pipeline_mode<synchronous>, transform_indices = @transform_2, window_bounds = array<i64: 4, 32>}, {pipeline_mode = #tpu.pipeline_mode<synchronous>, transform_indices = @transform_3, window_bounds = array<i64: 11, 32>}, {pipeline_mode = #tpu.pipeline_mode<synchronous>, transform_indices = @transform_4, window_bounds = array<i64: 7, 32>}, {pipeline_mode = #tpu.pipeline_mode<synchronous>, transform_indices = @transform_5, window_bounds = array<i64: 1, 32>}, {pipeline_mode = #tpu.pipeline_mode<synchronous>, transform_indices = @transform_6, window_bounds = array<i64: 32, 8>}, {pipeline_mode = #tpu.pipeline_mode<synchronous>, transform_indices = @transform_7, window_bounds = array<i64: 1, 8>}, {transform_indices = @transform_8, window_bounds = array<i64: 8, 8>}]} {
    %c0 = arith.constant 0 : index
    %c0_0 = arith.constant 0 : index
    %0 = vector.load %arg1[%c0, %c0_0] : memref<8x4xf32, #tpu.memory_space<vmem>>, vector<8x4xf32>
    %c0_1 = arith.constant 0 : index
    %c0_2 = arith.constant 0 : index
    %1 = vector.load %arg2[%c0_1, %c0_2] : memref<8x6xi32, #tpu.memory_space<vmem>>, vector<8x6xi32>
    %c0_3 = arith.constant 0 : index
    %c0_4 = arith.constant 0 : index
    %2 = vector.load %arg3[%c0_3, %c0_4] : memref<4x32xf32, #tpu.memory_space<vmem>>, vector<4x32xf32>
    %cst = arith.constant dense<0.000000e+00> : vector<8x32xf32>
    %3 = tpu.matmul %0, %2, %cst {dimension_numbers = #tpu.dot_dimension_numbers<[1], [0], [0], [1], [0, 0, 1, 1], [], []>} : vector<8x4xf32>, vector<4x32xf32>, vector<8x32xf32> -> vector<8x32xf32>
    %4 = tpu.iota {dimensions = array<i32: 1>} : vector<8x11xi32>
    %5 = vector.extract_strided_slice %1 {offsets = [0, 0], sizes = [8, 3], strides = [1, 1]} : vector<8x6xi32> to vector<8x3xi32>
    %cst_5 = arith.constant 0.000000e+00 : f32
    %6 = vector.broadcast %cst_5 : f32 to vector<8x11xf32>
    %cst_6 = arith.constant 0.000000e+00 : f32
    %7 = vector.broadcast %cst_6 : f32 to vector<8x1xf32>
    %8 = vector.extract_strided_slice %5 {offsets = [0, 0], sizes = [8, 1], strides = [1, 1]} : vector<8x3xi32> to vector<8x1xi32>
    %9 = vector.broadcast %8 : vector<8x1xi32> to vector<8x11xi32>
    %10 = arith.cmpi eq, %9, %4 : vector<8x11xi32>
    %11 = arith.extui %10 : vector<8x11xi1> to vector<8x11xi32>
    %12 = arith.sitofp %11 : vector<8x11xi32> to vector<8x11xf32>
    %13 = arith.addf %6, %12 : vector<8x11xf32>
    %c0_i32 = arith.constant 0 : i32
    %14 = vector.broadcast %c0_i32 : i32 to vector<8x1xi32>
    %15 = arith.cmpi ne, %8, %14 : vector<8x1xi32>
    %16 = arith.extui %15 : vector<8x1xi1> to vector<8x1xi32>
    %17 = arith.sitofp %16 : vector<8x1xi32> to vector<8x1xf32>
    %18 = arith.addf %7, %17 : vector<8x1xf32>
    %19 = vector.extract_strided_slice %5 {offsets = [0, 1], sizes = [8, 1], strides = [1, 1]} : vector<8x3xi32> to vector<8x1xi32>
    %20 = vector.broadcast %19 : vector<8x1xi32> to vector<8x11xi32>
    %21 = arith.cmpi eq, %20, %4 : vector<8x11xi32>
    %22 = arith.extui %21 : vector<8x11xi1> to vector<8x11xi32>
    %23 = arith.sitofp %22 : vector<8x11xi32> to vector<8x11xf32>
    %24 = arith.addf %13, %23 : vector<8x11xf32>
    %c0_i32_7 = arith.constant 0 : i32
    %25 = vector.broadcast %c0_i32_7 : i32 to vector<8x1xi32>
    %26 = arith.cmpi ne, %19, %25 : vector<8x1xi32>
    %27 = arith.extui %26 : vector<8x1xi1> to vector<8x1xi32>
    %28 = arith.sitofp %27 : vector<8x1xi32> to vector<8x1xf32>
    %29 = arith.addf %18, %28 : vector<8x1xf32>
    %30 = vector.extract_strided_slice %5 {offsets = [0, 2], sizes = [8, 1], strides = [1, 1]} : vector<8x3xi32> to vector<8x1xi32>
    %31 = vector.broadcast %30 : vector<8x1xi32> to vector<8x11xi32>
    %32 = arith.cmpi eq, %31, %4 : vector<8x11xi32>
    %33 = arith.extui %32 : vector<8x11xi1> to vector<8x11xi32>
    %34 = arith.sitofp %33 : vector<8x11xi32> to vector<8x11xf32>
    %35 = arith.addf %24, %34 : vector<8x11xf32>
    %c0_i32_8 = arith.constant 0 : i32
    %36 = vector.broadcast %c0_i32_8 : i32 to vector<8x1xi32>
    %37 = arith.cmpi ne, %30, %36 : vector<8x1xi32>
    %38 = arith.extui %37 : vector<8x1xi1> to vector<8x1xi32>
    %39 = arith.sitofp %38 : vector<8x1xi32> to vector<8x1xf32>
    %40 = arith.addf %29, %39 : vector<8x1xf32>
    %cst_9 = arith.constant 1.000000e+00 : f32
    %41 = vector.broadcast %cst_9 : f32 to vector<8x1xf32>
    %42 = arith.maximumf %40, %41 : vector<8x1xf32>
    %43 = tpu.reciprocal %42 {approx = true} : vector<8x1xf32> -> vector<8x1xf32>
    %44 = vector.broadcast %43 : vector<8x1xf32> to vector<8x11xf32>
    %45 = arith.mulf %35, %44 : vector<8x11xf32>
    %c0_10 = arith.constant 0 : index
    %c0_11 = arith.constant 0 : index
    %46 = vector.load %arg4[%c0_10, %c0_11] : memref<11x32xf32, #tpu.memory_space<vmem>>, vector<11x32xf32>
    %cst_12 = arith.constant dense<0.000000e+00> : vector<8x32xf32>
    %47 = tpu.matmul %45, %46, %cst_12 {dimension_numbers = #tpu.dot_dimension_numbers<[1], [0], [0], [1], [0, 0, 1, 1], [], []>} : vector<8x11xf32>, vector<11x32xf32>, vector<8x32xf32> -> vector<8x32xf32>
    %48 = arith.addf %3, %47 : vector<8x32xf32>
    %49 = vector.extract_strided_slice %1 {offsets = [0, 3], sizes = [8, 3], strides = [1, 1]} : vector<8x6xi32> to vector<8x3xi32>
    %50 = vector.extract_strided_slice %4 {offsets = [0, 0], sizes = [8, 7], strides = [1, 1]} : vector<8x11xi32> to vector<8x7xi32>
    %cst_13 = arith.constant 0.000000e+00 : f32
    %51 = vector.broadcast %cst_13 : f32 to vector<8x7xf32>
    %cst_14 = arith.constant 0.000000e+00 : f32
    %52 = vector.broadcast %cst_14 : f32 to vector<8x1xf32>
    %53 = vector.extract_strided_slice %49 {offsets = [0, 0], sizes = [8, 1], strides = [1, 1]} : vector<8x3xi32> to vector<8x1xi32>
    %54 = vector.broadcast %53 : vector<8x1xi32> to vector<8x7xi32>
    %55 = arith.cmpi eq, %54, %50 : vector<8x7xi32>
    %56 = arith.extui %55 : vector<8x7xi1> to vector<8x7xi32>
    %57 = arith.sitofp %56 : vector<8x7xi32> to vector<8x7xf32>
    %58 = arith.addf %51, %57 : vector<8x7xf32>
    %c0_i32_15 = arith.constant 0 : i32
    %59 = vector.broadcast %c0_i32_15 : i32 to vector<8x1xi32>
    %60 = arith.cmpi ne, %53, %59 : vector<8x1xi32>
    %61 = arith.extui %60 : vector<8x1xi1> to vector<8x1xi32>
    %62 = arith.sitofp %61 : vector<8x1xi32> to vector<8x1xf32>
    %63 = arith.addf %52, %62 : vector<8x1xf32>
    %64 = vector.extract_strided_slice %49 {offsets = [0, 1], sizes = [8, 1], strides = [1, 1]} : vector<8x3xi32> to vector<8x1xi32>
    %65 = vector.broadcast %64 : vector<8x1xi32> to vector<8x7xi32>
    %66 = arith.cmpi eq, %65, %50 : vector<8x7xi32>
    %67 = arith.extui %66 : vector<8x7xi1> to vector<8x7xi32>
    %68 = arith.sitofp %67 : vector<8x7xi32> to vector<8x7xf32>
    %69 = arith.addf %58, %68 : vector<8x7xf32>
    %c0_i32_16 = arith.constant 0 : i32
    %70 = vector.broadcast %c0_i32_16 : i32 to vector<8x1xi32>
    %71 = arith.cmpi ne, %64, %70 : vector<8x1xi32>
    %72 = arith.extui %71 : vector<8x1xi1> to vector<8x1xi32>
    %73 = arith.sitofp %72 : vector<8x1xi32> to vector<8x1xf32>
    %74 = arith.addf %63, %73 : vector<8x1xf32>
    %75 = vector.extract_strided_slice %49 {offsets = [0, 2], sizes = [8, 1], strides = [1, 1]} : vector<8x3xi32> to vector<8x1xi32>
    %76 = vector.broadcast %75 : vector<8x1xi32> to vector<8x7xi32>
    %77 = arith.cmpi eq, %76, %50 : vector<8x7xi32>
    %78 = arith.extui %77 : vector<8x7xi1> to vector<8x7xi32>
    %79 = arith.sitofp %78 : vector<8x7xi32> to vector<8x7xf32>
    %80 = arith.addf %69, %79 : vector<8x7xf32>
    %c0_i32_17 = arith.constant 0 : i32
    %81 = vector.broadcast %c0_i32_17 : i32 to vector<8x1xi32>
    %82 = arith.cmpi ne, %75, %81 : vector<8x1xi32>
    %83 = arith.extui %82 : vector<8x1xi1> to vector<8x1xi32>
    %84 = arith.sitofp %83 : vector<8x1xi32> to vector<8x1xf32>
    %85 = arith.addf %74, %84 : vector<8x1xf32>
    %cst_18 = arith.constant 1.000000e+00 : f32
    %86 = vector.broadcast %cst_18 : f32 to vector<8x1xf32>
    %87 = arith.maximumf %85, %86 : vector<8x1xf32>
    %88 = tpu.reciprocal %87 {approx = true} : vector<8x1xf32> -> vector<8x1xf32>
    %89 = vector.broadcast %88 : vector<8x1xf32> to vector<8x7xf32>
    %90 = arith.mulf %80, %89 : vector<8x7xf32>
    %c0_19 = arith.constant 0 : index
    %c0_20 = arith.constant 0 : index
    %91 = vector.load %arg5[%c0_19, %c0_20] : memref<7x32xf32, #tpu.memory_space<vmem>>, vector<7x32xf32>
    %cst_21 = arith.constant dense<0.000000e+00> : vector<8x32xf32>
    %92 = tpu.matmul %90, %91, %cst_21 {dimension_numbers = #tpu.dot_dimension_numbers<[1], [0], [0], [1], [0, 0, 1, 1], [], []>} : vector<8x7xf32>, vector<7x32xf32>, vector<8x32xf32> -> vector<8x32xf32>
    %93 = arith.addf %48, %92 : vector<8x32xf32>
    %c0_22 = arith.constant 0 : index
    %c0_23 = arith.constant 0 : index
    %94 = vector.load %arg6[%c0_22, %c0_23] : memref<1x32xf32, #tpu.memory_space<vmem>>, vector<1x32xf32>
    %95 = vector.broadcast %94 : vector<1x32xf32> to vector<8x32xf32>
    %96 = arith.addf %93, %95 : vector<8x32xf32>
    %cst_24 = arith.constant 0.000000e+00 : f32
    %97 = vector.broadcast %cst_24 : f32 to vector<8x32xf32>
    %98 = arith.maximumf %96, %97 : vector<8x32xf32>
    %c0_25 = arith.constant 0 : index
    %c0_26 = arith.constant 0 : index
    %99 = vector.load %arg7[%c0_25, %c0_26] : memref<32x8xf32, #tpu.memory_space<vmem>>, vector<32x8xf32>
    %cst_27 = arith.constant dense<0.000000e+00> : vector<8x8xf32>
    %100 = tpu.matmul %98, %99, %cst_27 {dimension_numbers = #tpu.dot_dimension_numbers<[1], [0], [0], [1], [0, 0, 1, 1], [], []>} : vector<8x32xf32>, vector<32x8xf32>, vector<8x8xf32> -> vector<8x8xf32>
    %c0_28 = arith.constant 0 : index
    %c0_29 = arith.constant 0 : index
    %101 = vector.load %arg8[%c0_28, %c0_29] : memref<1x8xf32, #tpu.memory_space<vmem>>, vector<1x8xf32>
    %102 = vector.broadcast %101 : vector<1x8xf32> to vector<8x8xf32>
    %103 = arith.addf %100, %102 : vector<8x8xf32>
    %c0_30 = arith.constant 0 : index
    %c0_31 = arith.constant 0 : index
    %104 = vector.load %arg9[%c0_30, %c0_31] : memref<8x8xf32, #tpu.memory_space<vmem>>, vector<8x8xf32>
    tpu.vector_store %arg9[%c0_30, %c0_31], %103 {strides = array<i32>} : memref<8x8xf32, #tpu.memory_space<vmem>>, vector<8x8xf32>,
    return
  }
  func.func @transform_0(%arg0: i32) -> (i32, i32) {
    %c0_i32 = arith.constant 0 : i32
    %c0_i32_0 = arith.constant 0 : i32
    return %arg0, %c0_i32 : i32, i32
  }
  func.func @transform_1(%arg0: i32) -> (i32, i32) {
    %c0_i32 = arith.constant 0 : i32
    %c0_i32_0 = arith.constant 0 : i32
    return %arg0, %c0_i32 : i32, i32
  }
  func.func @transform_2(%arg0: i32) -> (i32, i32) {
    %c0_i32 = arith.constant 0 : i32
    %c0_i32_0 = arith.constant 0 : i32
    %c0_i32_1 = arith.constant 0 : i32
    return %c0_i32, %c0_i32_0 : i32, i32
  }
  func.func @transform_3(%arg0: i32) -> (i32, i32) {
    %c0_i32 = arith.constant 0 : i32
    %c0_i32_0 = arith.constant 0 : i32
    %c0_i32_1 = arith.constant 0 : i32
    return %c0_i32, %c0_i32_0 : i32, i32
  }
  func.func @transform_4(%arg0: i32) -> (i32, i32) {
    %c0_i32 = arith.constant 0 : i32
    %c0_i32_0 = arith.constant 0 : i32
    %c0_i32_1 = arith.constant 0 : i32
    return %c0_i32, %c0_i32_0 : i32, i32
  }
  func.func @transform_5(%arg0: i32) -> (i32, i32) {
    %c0_i32 = arith.constant 0 : i32
    %c0_i32_0 = arith.constant 0 : i32
    %c0_i32_1 = arith.constant 0 : i32
    return %c0_i32, %c0_i32_0 : i32, i32
  }
  func.func @transform_6(%arg0: i32) -> (i32, i32) {
    %c0_i32 = arith.constant 0 : i32
    %c0_i32_0 = arith.constant 0 : i32
    %c0_i32_1 = arith.constant 0 : i32
    return %c0_i32, %c0_i32_0 : i32, i32
  }
  func.func @transform_7(%arg0: i32) -> (i32, i32) {
    %c0_i32 = arith.constant 0 : i32
    %c0_i32_0 = arith.constant 0 : i32
    %c0_i32_1 = arith.constant 0 : i32
    return %c0_i32, %c0_i32_0 : i32, i32
  }
  func.func @transform_8(%arg0: i32) -> (i32, i32) {
    %c0_i32 = arith.constant 0 : i32
    %c0_i32_0 = arith.constant 0 : i32
    return %arg0, %c0_i32 : i32, i32
  }
}

</mosaic_0001>

<llo_original>
// kernel: tpu_custom_call.1
$region0: #{tpu_custom_call.1}
  #allocation0 [shape = 'u32[]', space=smem, size = 0x4, offset = 0x4, fixed_abs, tag = 'smem constant byte address 0x4 - core index']
  #allocation1 [shape = 'u32[144,128]{1,0:T(1,128)}', space=vmem, size = 0x12000, scoped, tag = 'internal scratch']
  %s0 = inlined_call_operand.vmem [shape: f32[8,4], index: 0, kind: input, shape index: {}]
  %s1 = inlined_call_operand.vmem [shape: s32[8,6], index: 1, kind: input, shape index: {}]
  %s2 = inlined_call_operand.vmem [shape: f32[4,32], index: 2, kind: input, shape index: {}]
  %s3 = inlined_call_operand.vmem [shape: f32[11,32], index: 3, kind: input, shape index: {}]
  %s4 = inlined_call_operand.vmem [shape: f32[7,32], index: 4, kind: input, shape index: {}]
  %s5 = inlined_call_operand.vmem [shape: f32[1,32], index: 5, kind: input, shape index: {}]
  %s6 = inlined_call_operand.vmem [shape: f32[32,8], index: 6, kind: input, shape index: {}]
  %s7 = inlined_call_operand.vmem [shape: f32[1,8], index: 7, kind: input, shape index: {}]
  %s8 = inlined_call_operand.hbm [shape: f32[8,8], index: 8, kind: output, shape index: {}]
  %s9 = sld [smem:[#allocation0]]
  $region42: #{tpu_custom_call.1} parent=0
    _
  %s11 = ssub.s32 1, %s9
  %s12 = scalar_select 0, %s11, %s9
  $region1: #{tpu_custom_call.1} parent=0
    #allocation2 [shape = 'u8[4096]{0}', space=vmem, size = 0x1000, scoped, tag = 'output window, operand 0, single buffered']
    #allocation3 [shape = 's32[1]{0}', space=sflag, size = 0x4, scoped, tag = 'scoped memory for tpu_custom_call.1']
    %13 = vsyncpa [#allocation3], 0
    // Predicated region
    $region2: #{tpu_custom_call.1} parent=1 // pred_check
      _
    $region3: #{tpu_custom_call.1} parent=1 // pred_check_branch
      %15 = sbr.rel (0) target = $region5
    $region4: #{tpu_custom_call.1} parent=1 // pred_region
      _
    $region5: #{tpu_custom_call.1} parent=1 // pred_fallthru
      _
    // Predicated region
    $region6: #{tpu_custom_call.1} parent=1 // pred_check
      _
    $region7: #{tpu_custom_call.1} parent=1 // pred_check_branch
      %17 = sbr.rel (0) target = $region9
    $region8: #{tpu_custom_call.1} parent=1 // pred_region
      _
    $region9: #{tpu_custom_call.1} parent=1 // pred_fallthru
      _
    // Predicated region
    $region10: #{tpu_custom_call.1} parent=1 // pred_check
      _
    $region11: #{tpu_custom_call.1} parent=1 // pred_check_branch
      %19 = sbr.rel (0) target = $region13
    $region12: #{tpu_custom_call.1} parent=1 // pred_region
      _
    $region13: #{tpu_custom_call.1} parent=1 // pred_fallthru
      _
    // Predicated region
    $region14: #{tpu_custom_call.1} parent=1 // pred_check
      _
    $region15: #{tpu_custom_call.1} parent=1 // pred_check_branch
      %21 = sbr.rel (0) target = $region17
    $region16: #{tpu_custom_call.1} parent=1 // pred_region
      _
    $region17: #{tpu_custom_call.1} parent=1 // pred_fallthru
      _
    // Predicated region
    $region18: #{tpu_custom_call.1} parent=1 // pred_check
      _
    $region19: #{tpu_custom_call.1} parent=1 // pred_check_branch
      %23 = sbr.rel (0) target = $region21
    $region20: #{tpu_custom_call.1} parent=1 // pred_region
      _
    $region21: #{tpu_custom_call.1} parent=1 // pred_fallthru
      _
    // Predicated region
    $region22: #{tpu_custom_call.1} parent=1 // pred_check
      _
    $region23: #{tpu_custom_call.1} parent=1 // pred_check_branch
      %25 = sbr.rel (0) target = $region25
    $region24: #{tpu_custom_call.1} parent=1 // pred_region
      _
    $region25: #{tpu_custom_call.1} parent=1 // pred_fallthru
      _
    // Predicated region
    $region26: #{tpu_custom_call.1} parent=1 // pred_check
      _
    $region27: #{tpu_custom_call.1} parent=1 // pred_check_branch
      %27 = sbr.rel (0) target = $region29
    $region28: #{tpu_custom_call.1} parent=1 // pred_region
      _
    $region29: #{tpu_custom_call.1} parent=1 // pred_fallthru
      _
    // Predicated region
    $region30: #{tpu_custom_call.1} parent=1 // pred_check
      _
    $region31: #{tpu_custom_call.1} parent=1 // pred_check_branch
      %29 = sbr.rel (0) target = $region33
    $region32: #{tpu_custom_call.1} parent=1 // pred_region
      _
    $region33: #{tpu_custom_call.1} parent=1 // pred_fallthru
      _
    %v30 = vld [vmem:[%s0] sm:$0xff]
    %v31 = vld [vmem:[%s1] sm:$0xff]
    %v32 = vld [vmem:[%s2] sm:$0xf]
    %v33 = vlaneseq
    %v34 = vand.u32 %v33, 127
    %35 = vset.pattern.permute.xlu0 0
    %36 = vperm.xlu0 %35, %v31
    %v37 = vpop.permute.xlu0 %36
    %vm38 = vcmp.eq.s32.totalorder %v37, %v34
    %v39 = vsel %vm38, 1, 0
    %v40 = vcvt.s32.f32 %v39
    %v41 = vadd.f32 %v40, 0.0
    %vm42 = vcmp.ne.s32.totalorder %v31, 0
    %v43 = vsel %vm42, 1, 0
    %v44 = vcvt.s32.f32 %v43
    %v45 = vadd.f32 %v44, 0.0
    %46 = vset.pattern.permute.xlu0 1
    %47 = vperm.xlu0 %46, %v31
    %v48 = vpop.permute.xlu0 %47
    %vm49 = vcmp.eq.s32.totalorder %v48, %v34
    %v50 = vsel %vm49, 1, 0
    %v51 = vcvt.s32.f32 %v50
    %v52 = vadd.f32 %v41, %v51
    %54 = vrot.lane.b32.xlu0 %v44, 127
    %v55 = vpop.permute.xlu0 %54
    %v57 = vadd.f32 %v45, %v55
    %58 = vset.pattern.permute.xlu0 2
    %59 = vperm.xlu0 %58, %v31
    %v60 = vpop.permute.xlu0 %59
    %vm61 = vcmp.eq.s32.totalorder %v60, %v34
    %v62 = vsel %vm61, 1, 0
    %v63 = vcvt.s32.f32 %v62
    %v64 = vadd.f32 %v52, %v63
    %65 = vrot.lane.b32.xlu0 %v44, 126
    %v66 = vpop.permute.xlu0 %65
    %v68 = vadd.f32 %v57, %v66
    %v69 = vmax.f32 %v68, 1.0
    %v70 = vrcp.pop %v69
    %72 = vset.pattern.permute.xlu0 0
    %73 = vperm.xlu0 %72, %v70
    %v74 = vpop.permute.xlu0 %73
    %v76 = vmul.f32 %v64, %v74
    %v77 = vld [vmem:[%s3] sm:$0xff]
    %v78 = vld [vmem:[%s3 + $0x8] sm:$0x7]
    %vm79 = vcmask 89088
    %v81 = vsel %vm79, %v76, 0
    %vm83 = vcmask 1042432
    %v85 = vsel %vm83, %v78, 0
    %87 = vmatprep.subr.mxu0 0.0
    %88 = vmatpush1.msra.mxu0 %v77
    %89 = vmatprep.subr.mxu0 0.0
    %90 = vmatpush1.msra.mxu0 %v85
    %91 = vmatprep.subr.mxu0 0.0
    %92 = vmatpush1.msra.mxu0 0.0
    %93 = vmatprep.subr.mxu0 0.0
    %94 = vmatpush1.msra.mxu0 0.0
    %95 = vmatprep.subr.mxu0 0.0
    %96 = vmatpush1.msra.mxu0 0.0
    %97 = vmatprep.subr.mxu0 0.0
    %98 = vmatpush1.msra.mxu0 0.0
    %99 = vmatprep.subr.mxu0 0.0
    %100 = vmatpush1.msra.mxu0 0.0
    %101 = vmatprep.subr.mxu0 0.0
    %102 = vmatpush1.msra.mxu0 0.0
    %103 = vmatprep.subr.mxu0 0.0
    %104 = vmatpush1.msra.mxu0 0.0
    %105 = vmatprep.subr.mxu0 0.0
    %106 = vmatpush1.msra.mxu0 0.0
    %107 = vmatprep.subr.mxu0 0.0
    %108 = vmatpush1.msra.mxu0 0.0
    %109 = vmatprep.subr.mxu0 0.0
    %110 = vmatpush1.msra.mxu0 0.0
    %111 = vmatprep.subr.mxu0 0.0
    %112 = vmatpush1.msra.mxu0 0.0
    %113 = vmatprep.subr.mxu0 0.0
    %114 = vmatpush1.msra.mxu0 0.0
    %115 = vmatprep.subr.mxu0 0.0
    %116 = vmatpush1.msra.mxu0 0.0
    %117 = vmatprep.subr.mxu0 0.0
    %118 = vmatpush1.msra.mxu0 0.0
    %119 = vmatprep.subr.mxu0 0.0
    %120 = vmatpush1.msra.mxu0 0.0
    %121 = vmatprep.subr.mxu0 0.0
    %122 = vmatpush1.msra.mxu0 0.0
    %123 = vmatprep.subr.mxu0 0.0
    %124 = vmatpush1.msra.mxu0 0.0
    %125 = vmatprep.subr.mxu0 0.0
    %126 = vmatpush1.msra.mxu0 0.0
    %127 = vmatprep.subr.mxu0 0.0
    %128 = vmatpush1.msra.mxu0 0.0
    %129 = vmatprep.subr.mxu0 0.0
    %130 = vmatpush1.msra.mxu0 0.0
    %131 = vmatprep.subr.mxu0 0.0
    %132 = vmatpush1.msra.mxu0 0.0
    %133 = vmatprep.subr.mxu0 0.0
    %134 = vmatpush1.msra.mxu0 0.0
    %135 = vmatprep.subr.mxu0 0.0
    %136 = vmatpush1.msra.mxu0 0.0
    %137 = vmatprep.subr.mxu0 0.0
    %138 = vmatpush1.msra.mxu0 0.0
    %139 = vmatprep.subr.mxu0 0.0
    %140 = vmatpush1.msra.mxu0 0.0
    %141 = vmatprep.subr.mxu0 0.0
    %142 = vmatpush1.msra.mxu0 0.0
    %143 = vmatprep.subr.mxu0 0.0
    %144 = vmatpush1.msra.mxu0 0.0
    %145 = vmatprep.subr.mxu0 0.0
    %146 = vmatpush1.msra.mxu0 0.0
    %147 = vmatprep.subr.mxu0 0.0
    %148 = vmatpush1.msra.mxu0 0.0
    %149 = vmatprep.subr.mxu0 0.0
    %150 = vmatpush1.msra.mxu0 0.0
    %151 = vmatprep.mubr.f32.mxu0 0.0
    %152 = vmatmul.mubr.f32.gmra.mrb[0].mxu0 %v81
    %v153 = vpop.f32.mrb[0].mxu0
    %v154 = vadd.f32 0.0, %v153
    %v155 = vpop.f32.mrb[0].mxu0
    %156 = vdwg.mxu0
    %vm157 = vcmask 31744
    %v159 = vsel %vm157, %v30, 0
    %vm161 = vcmask 1043456
    %v163 = vsel %vm161, %v32, 0
    %165 = vmatprep.subr.mxu0 0.0
    %166 = vmatpush1.msra.mxu0 %v163
    %167 = vmatprep.subr.mxu0 0.0
    %168 = vmatpush1.msra.mxu0 0.0
    %169 = vmatprep.subr.mxu0 0.0
    %170 = vmatpush1.msra.mxu0 0.0
    %171 = vmatprep.subr.mxu0 0.0
    %172 = vmatpush1.msra.mxu0 0.0
    %173 = vmatprep.subr.mxu0 0.0
    %174 = vmatpush1.msra.mxu0 0.0
    %175 = vmatprep.subr.mxu0 0.0
    %176 = vmatpush1.msra.mxu0 0.0
    %177 = vmatprep.subr.mxu0 0.0
    %178 = vmatpush1.msra.mxu0 0.0
    %179 = vmatprep.subr.mxu0 0.0
    %180 = vmatpush1.msra.mxu0 0.0
    %181 = vmatprep.subr.mxu0 0.0
    %182 = vmatpush1.msra.mxu0 0.0
    %183 = vmatprep.subr.mxu0 0.0
    %184 = vmatpush1.msra.mxu0 0.0
    %185 = vmatprep.subr.mxu0 0.0
    %186 = vmatpush1.msra.mxu0 0.0
    %187 = vmatprep.subr.mxu0 0.0
    %188 = vmatpush1.msra.mxu0 0.0
    %189 = vmatprep.subr.mxu0 0.0
    %190 = vmatpush1.msra.mxu0 0.0
    %191 = vmatprep.subr.mxu0 0.0
    %192 = vmatpush1.msra.mxu0 0.0
    %193 = vmatprep.subr.mxu0 0.0
    %194 = vmatpush1.msra.mxu0 0.0
    %195 = vmatprep.subr.mxu0 0.0
    %196 = vmatpush1.msra.mxu0 0.0
    %197 = vmatprep.subr.mxu0 0.0
    %198 = vmatpush1.msra.mxu0 0.0
    %199 = vmatprep.subr.mxu0 0.0
    %200 = vmatpush1.msra.mxu0 0.0
    %201 = vmatprep.subr.mxu0 0.0
    %202 = vmatpush1.msra.mxu0 0.0
    %203 = vmatprep.subr.mxu0 0.0
    %204 = vmatpush1.msra.mxu0 0.0
    %205 = vmatprep.subr.mxu0 0.0
    %206 = vmatpush1.msra.mxu0 0.0
    %207 = vmatprep.subr.mxu0 0.0
    %208 = vmatpush1.msra.mxu0 0.0
    %209 = vmatprep.subr.mxu0 0.0
    %210 = vmatpush1.msra.mxu0 0.0
    %211 = vmatprep.subr.mxu0 0.0
    %212 = vmatpush1.msra.mxu0 0.0
    %213 = vmatprep.subr.mxu0 0.0
    %214 = vmatpush1.msra.mxu0 0.0
    %215 = vmatprep.subr.mxu0 0.0
    %216 = vmatpush1.msra.mxu0 0.0
    %217 = vmatprep.subr.mxu0 0.0
    %218 = vmatpush1.msra.mxu0 0.0
    %219 = vmatprep.subr.mxu0 0.0
    %220 = vmatpush1.msra.mxu0 0.0
    %221 = vmatprep.subr.mxu0 0.0
    %222 = vmatpush1.msra.mxu0 0.0
    %223 = vmatprep.subr.mxu0 0.0
    %224 = vmatpush1.msra.mxu0 0.0
    %225 = vmatprep.subr.mxu0 0.0
    %226 = vmatpush1.msra.mxu0 0.0
    %227 = vmatprep.subr.mxu0 0.0
    %228 = vmatpush1.msra.mxu0 0.0
    %229 = vmatprep.mubr.f32.mxu0 0.0
    %230 = vmatmul.mubr.f32.gmra.mrb[0].mxu0 %v159
    %v231 = vpop.f32.mrb[0].mxu0
    %v232 = vadd.f32 %v154, %v231
    %v233 = vpop.f32.mrb[0].mxu0
    %234 = vdwg.mxu0
    %235 = vset.pattern.permute.xlu0 3
    %236 = vperm.xlu0 %235, %v31
    %v237 = vpop.permute.xlu0 %236
    %vm238 = vcmp.eq.s32.totalorder %v237, %v34
    %v239 = vsel %vm238, 1, 0
    %v240 = vcvt.s32.f32 %v239
    %v241 = vadd.f32 %v240, 0.0
    %242 = vset.pattern.permute.xlu0 4
    %243 = vperm.xlu0 %242, %v31
    %v244 = vpop.permute.xlu0 %243
    %vm245 = vcmp.eq.s32.totalorder %v244, %v34
    %v246 = vsel %vm245, 1, 0
    %v247 = vcvt.s32.f32 %v246
    %v248 = vadd.f32 %v241, %v247
    %249 = vset.pattern.permute.xlu0 5
    %250 = vperm.xlu0 %249, %v31
    %v251 = vpop.permute.xlu0 %250
    %vm252 = vcmp.eq.s32.totalorder %v251, %v34
    %v253 = vsel %vm252, 1, 0
    %v254 = vcvt.s32.f32 %v253
    %v255 = vadd.f32 %v248, %v254
    %256 = vset.pattern.permute.xlu0 3
    %257 = vperm.xlu0 %256, %v70
    %v258 = vpop.permute.xlu0 %257
    %v260 = vmul.f32 %v255, %v258
    %v261 = vld [vmem:[%s4] sm:$0x7f]
    %vm262 = vcmask 56320
    %v264 = vsel %vm262, %v260, 0
    %vm266 = vcmask 1046528
    %v268 = vsel %vm266, %v261, 0
    %270 = vmatprep.subr.mxu0 0.0
    %271 = vmatpush1.msra.mxu0 %v268
    %272 = vmatprep.subr.mxu0 0.0
    %273 = vmatpush1.msra.mxu0 0.0
    %274 = vmatprep.subr.mxu0 0.0
    %275 = vmatpush1.msra.mxu0 0.0
    %276 = vmatprep.subr.mxu0 0.0
    %277 = vmatpush1.msra.mxu0 0.0
    %278 = vmatprep.subr.mxu0 0.0
    %279 = vmatpush1.msra.mxu0 0.0
    %280 = vmatprep.subr.mxu0 0.0
    %281 = vmatpush1.msra.mxu0 0.0
    %282 = vmatprep.subr.mxu0 0.0
    %283 = vmatpush1.msra.mxu0 0.0
    %284 = vmatprep.subr.mxu0 0.0
    %285 = vmatpush1.msra.mxu0 0.0
    %286 = vmatprep.subr.mxu0 0.0
    %287 = vmatpush1.msra.mxu0 0.0
    %288 = vmatprep.subr.mxu0 0.0
    %289 = vmatpush1.msra.mxu0 0.0
    %290 = vmatprep.subr.mxu0 0.0
    %291 = vmatpush1.msra.mxu0 0.0
    %292 = vmatprep.subr.mxu0 0.0
    %293 = vmatpush1.msra.mxu0 0.0
    %294 = vmatprep.subr.mxu0 0.0
    %295 = vmatpush1.msra.mxu0 0.0
    %296 = vmatprep.subr.mxu0 0.0
    %297 = vmatpush1.msra.mxu0 0.0
    %298 = vmatprep.subr.mxu0 0.0
    %299 = vmatpush1.msra.mxu0 0.0
    %300 = vmatprep.subr.mxu0 0.0
    %301 = vmatpush1.msra.mxu0 0.0
    %302 = vmatprep.subr.mxu0 0.0
    %303 = vmatpush1.msra.mxu0 0.0
    %304 = vmatprep.subr.mxu0 0.0
    %305 = vmatpush1.msra.mxu0 0.0
    %306 = vmatprep.subr.mxu0 0.0
    %307 = vmatpush1.msra.mxu0 0.0
    %308 = vmatprep.subr.mxu0 0.0
    %309 = vmatpush1.msra.mxu0 0.0
    %310 = vmatprep.subr.mxu0 0.0
    %311 = vmatpush1.msra.mxu0 0.0
    %312 = vmatprep.subr.mxu0 0.0
    %313 = vmatpush1.msra.mxu0 0.0
    %314 = vmatprep.subr.mxu0 0.0
    %315 = vmatpush1.msra.mxu0 0.0
    %316 = vmatprep.subr.mxu0 0.0
    %317 = vmatpush1.msra.mxu0 0.0
    %318 = vmatprep.subr.mxu0 0.0
    %319 = vmatpush1.msra.mxu0 0.0
    %320 = vmatprep.subr.mxu0 0.0
    %321 = vmatpush1.msra.mxu0 0.0
    %322 = vmatprep.subr.mxu0 0.0
    %323 = vmatpush1.msra.mxu0 0.0
    %324 = vmatprep.subr.mxu0 0.0
    %325 = vmatpush1.msra.mxu0 0.0
    %326 = vmatprep.subr.mxu0 0.0
    %327 = vmatpush1.msra.mxu0 0.0
    %328 = vmatprep.subr.mxu0 0.0
    %329 = vmatpush1.msra.mxu0 0.0
    %330 = vmatprep.subr.mxu0 0.0
    %331 = vmatpush1.msra.mxu0 0.0
    %332 = vmatprep.subr.mxu0 0.0
    %333 = vmatpush1.msra.mxu0 0.0
    %334 = vmatprep.mubr.f32.mxu0 0.0
    %335 = vmatmul.mubr.f32.gmra.mrb[0].mxu0 %v264
    %v336 = vpop.f32.mrb[0].mxu0
    %v337 = vadd.f32 0.0, %v336
    %v338 = vpop.f32.mrb[0].mxu0
    %339 = vdwg.mxu0
    %v340 = vadd.f32 %v232, %v337
    %v341 = vld [vmem:[%s5] sm:$0x1]
    %v343 = vlaneseq
    %v344 = vshrl.u32 %v343, 7
    %v345 = vsub.s32 0, %v344
    %v346 = vrot.slane %v341, %v345
    %v348 = vadd.f32 %v340, %v346
    %v349 = vmax.f32 %v348, 0.0
    %v350 = vld [vmem:[%s6] sm:$0xff]
    %v351 = vld [vmem:[%s6 + $0x8] sm:$0xff]
    %v352 = vld [vmem:[%s6 + $0x10] sm:$0xff]
    %v353 = vld [vmem:[%s6 + $0x18] sm:$0xff]
    %v354 = vld [vmem:[%s7] sm:$0x1]
    %v356 = vlaneseq
    %v357 = vshrl.u32 %v356, 7
    %v358 = vsub.s32 0, %v357
    %v359 = vrot.slane %v354, %v358
    %vm361 = vcmask 261120
    %v363 = vsel %vm361, %v349, 0
    %365 = vmatprep.subr.mxu0 0.0
    %366 = vmatpush1.msra.mxu0 %v350
    %367 = vmatprep.subr.mxu0 0.0
    %368 = vmatpush1.msra.mxu0 %v351
    %369 = vmatprep.subr.mxu0 0.0
    %370 = vmatpush1.msra.mxu0 %v352
    %371 = vmatprep.subr.mxu0 0.0
    %372 = vmatpush1.msra.mxu0 %v353
    %373 = vmatprep.subr.mxu0 0.0
    %374 = vmatpush1.msra.mxu0 0.0
    %375 = vmatprep.subr.mxu0 0.0
    %376 = vmatpush1.msra.mxu0 0.0
    %377 = vmatprep.subr.mxu0 0.0
    %378 = vmatpush1.msra.mxu0 0.0
    %379 = vmatprep.subr.mxu0 0.0
    %380 = vmatpush1.msra.mxu0 0.0
    %381 = vmatprep.subr.mxu0 0.0
    %382 = vmatpush1.msra.mxu0 0.0
    %383 = vmatprep.subr.mxu0 0.0
    %384 = vmatpush1.msra.mxu0 0.0
    %385 = vmatprep.subr.mxu0 0.0
    %386 = vmatpush1.msra.mxu0 0.0
    %387 = vmatprep.subr.mxu0 0.0
    %388 = vmatpush1.msra.mxu0 0.0
    %389 = vmatprep.subr.mxu0 0.0
    %390 = vmatpush1.msra.mxu0 0.0
    %391 = vmatprep.subr.mxu0 0.0
    %392 = vmatpush1.msra.mxu0 0.0
    %393 = vmatprep.subr.mxu0 0.0
    %394 = vmatpush1.msra.mxu0 0.0
    %395 = vmatprep.subr.mxu0 0.0
    %396 = vmatpush1.msra.mxu0 0.0
    %397 = vmatprep.subr.mxu0 0.0
    %398 = vmatpush1.msra.mxu0 0.0
    %399 = vmatprep.subr.mxu0 0.0
    %400 = vmatpush1.msra.mxu0 0.0
    %401 = vmatprep.subr.mxu0 0.0
    %402 = vmatpush1.msra.mxu0 0.0
    %403 = vmatprep.subr.mxu0 0.0
    %404 = vmatpush1.msra.mxu0 0.0
    %405 = vmatprep.subr.mxu0 0.0
    %406 = vmatpush1.msra.mxu0 0.0
    %407 = vmatprep.subr.mxu0 0.0
    %408 = vmatpush1.msra.mxu0 0.0
    %409 = vmatprep.subr.mxu0 0.0
    %410 = vmatpush1.msra.mxu0 0.0
    %411 = vmatprep.subr.mxu0 0.0
    %412 = vmatpush1.msra.mxu0 0.0
    %413 = vmatprep.subr.mxu0 0.0
    %414 = vmatpush1.msra.mxu0 0.0
    %415 = vmatprep.subr.mxu0 0.0
    %416 = vmatpush1.msra.mxu0 0.0
    %417 = vmatprep.subr.mxu0 0.0
    %418 = vmatpush1.msra.mxu0 0.0
    %419 = vmatprep.subr.mxu0 0.0
    %420 = vmatpush1.msra.mxu0 0.0
    %421 = vmatprep.subr.mxu0 0.0
    %422 = vmatpush1.msra.mxu0 0.0
    %423 = vmatprep.subr.mxu0 0.0
    %424 = vmatpush1.msra.mxu0 0.0
    %425 = vmatprep.subr.mxu0 0.0
    %426 = vmatpush1.msra.mxu0 0.0
    %427 = vmatprep.subr.mxu0 0.0
    %428 = vmatpush1.msra.mxu0 0.0
    %429 = vmatprep.mubr.f32.mxu0 0.0
    %430 = vmatmul.mubr.f32.gmra.mrb[0].mxu0 %v363
    %v431 = vpop.f32.mrb[0].mxu0
    %v432 = vadd.f32 %v359, %v431
    %v433 = vpop.f32.mrb[0].mxu0
    %434 = vdwg.mxu0
    %vm435 = vcmask 64512
    %436 = vst.msk [vmem:[#allocation2] sm:$0xff] %vm435, %v432
    // Predicated region
    $region34: #{tpu_custom_call.1} parent=1 // pred_check
      _
    $region35: #{tpu_custom_call.1} parent=1 // pred_check_branch
      %438 = sbr.rel (0) target = $region37
    $region36: #{tpu_custom_call.1} parent=1 // pred_region
      %s440 = ssub.s32 128, 128
      %441 = vsyncadd [#allocation3], %s440
      %s443 = sshll.u32 [#allocation2], 4
      %s444 = int_to_ptr.vmem [resolvable:$true] %s443
      %446 = dma.vmem_to_hbm [thread:$0]  %s444, 128, %s8, [#allocation3]
    $region37: #{tpu_custom_call.1} parent=1 // pred_fallthru
      _
    // Predicated region
    $region38: #{tpu_custom_call.1} parent=1 // pred_check
      _
    $region39: #{tpu_custom_call.1} parent=1 // pred_check_branch
      %448 = sbr.rel (0) target = $region41
    $region40: #{tpu_custom_call.1} parent=1 // pred_region
      %449 = dma.done [#allocation3], 128
    $region41: #{tpu_custom_call.1} parent=1 // pred_fallthru
      _
    %450 = vsyncpa [#allocation3], 1

</llo_original>
